<compile_context>
chip_gen: v5e
topology: v5e:2x2
jax: 0.10.0
libtpu: 0.0.40
codegen_flags: <defaults>
</compile_context>

<pallas_src>
import functools

import jax
import jax.numpy as jnp
from jax.experimental import pallas as pl
from jax.experimental.pallas import tpu as pltpu


_ROLL_IS_JNP_ROLL = None


def _roll_matches_jnp():
    """One-time on-device probe of pltpu.roll's sign convention (vs jnp.roll)."""
    global _ROLL_IS_JNP_ROLL
    if _ROLL_IS_JNP_ROLL is None:
        def probe(x_ref, o_ref):
            o_ref[...] = pltpu.roll(x_ref[...], 1, axis=1)
        x = jnp.arange(8 * 128, dtype=jnp.float32).reshape(8, 128)
        y = pl.pallas_call(
            probe, out_shape=jax.ShapeDtypeStruct((8, 128), jnp.float32))(x)
        _ROLL_IS_JNP_ROLL = bool(jnp.array_equal(y, jnp.roll(x, 1, axis=1)))
    return _ROLL_IS_JNP_ROLL


def unet_convlstm_kernel(xcols_ref, ew_ref, eb_ref, wx_ref, wh_ref, lb_ref,
                         dw_ref, db_ref, out_ref, gx_ref,
                         *, T, H, W, hd, nc, nb, roll_like_jnp):
    HW = H * W
    NP = nb * HW          # pixel lanes per timestep handled in this grid step
    NT = T * NP           # pixel lanes of the hoisted (all-timestep) tensors
    f32 = jnp.float32
    bf16 = jnp.bfloat16

    def edge_masks(N):
        # (1, N) f32 {0,1} masks implementing SAME-padding zeros per tap.
        # Pixel lanes are row-major per HW-sized image, so the masks also kill
        # roll wrap-around across image / batch / timestep boundaries.
        col = jax.lax.broadcasted_iota(jnp.int32, (1, N), 1)
        y = (col % HW) // W
        x = col % W
        masks = {}
        for oy in (-1, 0, 1):
            for ox in (-1, 0, 1):
                cond = None
                for c in ((y >= 1) if oy == -1 else None,
                          (y <= H - 2) if oy == 1 else None,
                          (x >= 1) if ox == -1 else None,
                          (x <= W - 2) if ox == 1 else None):
                    if c is not None:
                        cond = c if cond is None else jnp.logical_and(cond, c)
                masks[(oy, ox)] = (None if cond is None
                                   else jnp.where(cond, 1.0, 0.0).astype(f32))
        return masks

    def im2col_T(zT, masks):
        # zT: (Cz, N) f32 channel-major.  Returns (9*Cz, N) bf16 with row order
        # (ky, kx, cin) -- matching the reshaped conv weight columns.
        Cz, N = zT.shape
        taps = []
        for ky in range(3):
            for kx in range(3):
                oy, ox = ky - 1, kx - 1
                off = oy * W + ox                        # neighbour pixel offset
                if off == 0:
                    tap = zT
                else:
                    shift = (-off) % N if roll_like_jnp else off % N
                    tap = pltpu.roll(zT, shift, axis=1)  # XLU lane rotate
                m = masks[(oy, ox)]
                if m is not None:
                    tap = tap * m                        # zero outside-image taps
                taps.append(tap.astype(bf16))
        return jnp.concatenate(taps, axis=0)

    masks_all = edge_masks(NT)     # hoisted all-timestep im2col
    masks_one = edge_masks(NP)     # per-step recurrent / decoder im2col

    # ---- encoder: every timestep (and stacked batch) in ONE matmul ----------
    xe_all = jnp.dot(ew_ref[...], xcols_ref[...],
                     preferred_element_type=f32) + eb_ref[...]        # (hd, NT)

    # ---- hoisted input half of the ConvLSTM conv (+ gate bias), one matmul --
    gx_ref[...] = (jnp.dot(wx_ref[...], im2col_T(xe_all, masks_all),
                           preferred_element_type=f32) + lb_ref[...])  # (4hd, NT)

    # Per-row activation scale: rows [0, 3hd) -> sigmoid(x) (i, f, o gates),
    # rows [3hd, 4hd) -> sigmoid(2x) so that 2*s - 1 == tanh(x) (g gate).
    row = jax.lax.broadcasted_iota(jnp.int32, (4 * hd, 1), 0)
    gscale = jnp.where(row >= 3 * hd, 2.0, 1.0).astype(f32)            # (4hd, 1)

    h0 = jnp.zeros((hd, NP), f32)
    c0 = jnp.zeros((hd, NP), f32)

    def step(gx_t, h, c):
        gates = jnp.dot(wh_ref[...], im2col_T(h, masks_one),
                        preferred_element_type=f32) + gx_t             # (4hd, NP)
        s = jax.nn.sigmoid(gates * gscale)          # one lane-dense EUP pass
        i_g = s[0 * hd:1 * hd]
        f_g = s[1 * hd:2 * hd]
        o_g = s[2 * hd:3 * hd]
        g_g = 2.0 * s[3 * hd:4 * hd] - 1.0          # == tanh(gate_g)
        c = f_g * c + i_g * g_g
        h = o_g * jnp.tanh(c)
        return h, c

    if T <= 8:
        h, c = h0, c0
        for t in range(T):                           # small T: full static unroll
            h, c = step(gx_ref[:, t * NP:(t + 1) * NP], h, c)
    else:
        def body(t, carry):                          # large T: bounded live ranges
            off = pl.multiple_of(t * NP, NP)
            return step(gx_ref[:, pl.ds(off, NP)], *carry)
        h, c = jax.lax.fori_loop(0, T, body, (h0, c0))

    # ---- decoder on final hidden state: lane-dense (nc, NP), NCHW-flat ------
    out_ref[...] = (jnp.dot(dw_ref[...], im2col_T(h, masks_one),
                            preferred_element_type=f32) + db_ref[...])


def _default_batch_block(B):
    # Single-TC chips (v2-v6): stack 2 batches along the pixel axis per grid
    # step (bigger matmul width, fewer grid-step boundaries).  On v7x keep one
    # batch per step so the 2-TC megacore shards the batch grid.
    try:
        kind = jax.devices()[0].device_kind.lower()
    except Exception:
        return 1
    if "v7" in kind or "7x" in kind:
        return 1
    return 2 if (B >= 2 and B % 2 == 0) else 1


def unet_convlstm_pallas(x, params, batch_block=None):
    """x: (B, T, C, H, W) float32 (PyTorch layout). Returns (B, n_classes, H, W)."""
    B, T, C, H, W = x.shape
    hd = params["enc_b"].shape[0]
    nc = params["dec_b"].shape[0]
    HW = H * W
    bf16 = jnp.bfloat16

    nb = batch_block if batch_block is not None else _default_batch_block(B)
    if B % nb != 0:
        nb = 1
    G = B // nb
    NP = nb * HW
    NT = T * NP

    roll_like_jnp = _roll_matches_jnp()

    # ---- wrapper-side layout plumbing (cheap XLA ops) ------------------------
    # Encoder im2col, channel-major: rows ordered (ky, kx, cin); pixel lanes
    # ordered (t, batch_in_block, pixel) so the kernel slices timestep slabs.
    xp = jnp.pad(x, ((0, 0), (0, 0), (0, 0), (1, 1), (1, 1)))
    xcols = jnp.concatenate(
        [xp[:, :, :, dy:dy + H, dx:dx + W]
         for dy in range(3) for dx in range(3)], axis=2)            # (B,T,9C,H,W)
    xcols = xcols.reshape(G, nb, T, 9 * C, HW)
    xcols = jnp.transpose(xcols, (0, 3, 2, 1, 4)).reshape(G, 9 * C, NT)
    xcols = xcols.astype(bf16)

    # Conv weights as transposed im2col matrices (column order (ky, kx, cin)),
    # bf16 operands / f32 accumulation.  The fused ConvLSTM weight is split
    # per-(ky, kx) tap into its x-half (Wx) and h-half (Wh).
    ewT = params["enc_w"].reshape(9 * C, hd).T.astype(bf16)              # (hd, 9C)
    lw = params["lstm_w"]                                                # (3,3,2hd,4hd)
    wxT = lw[:, :, :hd, :].reshape(9 * hd, 4 * hd).T.astype(bf16)        # (4hd, 9hd)
    whT = lw[:, :, hd:, :].reshape(9 * hd, 4 * hd).T.astype(bf16)        # (4hd, 9hd)
    dwT = params["dec_w"].reshape(9 * hd, nc).T.astype(bf16)             # (nc, 9hd)
    ebc = params["enc_b"].reshape(hd, 1).astype(jnp.float32)
    lbc = params["lstm_b"].reshape(4 * hd, 1).astype(jnp.float32)
    dbc = params["dec_b"].reshape(nc, 1).astype(jnp.float32)

    kernel = functools.partial(unet_convlstm_kernel, T=T, H=H, W=W, hd=hd,
                               nc=nc, nb=nb, roll_like_jnp=roll_like_jnp)

    def wspec(shape):
        return pl.BlockSpec(shape, lambda g: (0, 0))

    out = pl.pallas_call(
        kernel,
        out_shape=jax.ShapeDtypeStruct((G, nc, NP), jnp.float32),
        grid_spec=pltpu.PrefetchScalarGridSpec(
            num_scalar_prefetch=0,
            grid=(G,),
            in_specs=[
                pl.BlockSpec((None, 9 * C, NT), lambda g: (g, 0, 0)),
                wspec((hd, 9 * C)),
                wspec((hd, 1)),
                wspec((4 * hd, 9 * hd)),
                wspec((4 * hd, 9 * hd)),
                wspec((4 * hd, 1)),
                wspec((nc, 9 * hd)),
                wspec((nc, 1)),
            ],
            out_specs=pl.BlockSpec((None, nc, NP), lambda g: (g, 0, 0)),
            scratch_shapes=[pltpu.VMEM((4 * hd, NT), jnp.float32)],   # gates_x
        ),
        compiler_params=pltpu.CompilerParams(
            dimension_semantics=("parallel",),        # v7x megacore over batch
            vmem_limit_bytes=32 * 1024 * 1024),
    )(xcols, ewT, ebc, wxT, whT, lbc, dwT, dbc)

    # (G, nc, nb*HW) is already NCHW-flat per stacked batch: just un-stack.
    out = out.reshape(G, nc, nb, H, W)
    return jnp.transpose(out, (0, 2, 1, 3, 4)).reshape(B, nc, H, W)


# ------------------------- pure-JAX reference -------------------------------
def _conv3x3_ref(z, w, b):
    # SAME 3x3 conv; bf16 operands / f32 accumulation (same rounding as kernel).
    y = jax.lax.conv_general_dilated(
        z.astype(jnp.bfloat16), w.astype(jnp.bfloat16),
        window_strides=(1, 1), padding="SAME",
        dimension_numbers=("NHWC", "HWIO", "NHWC"),
        preferred_element_type=jnp.float32)
    return y + b.reshape(1, 1, 1, -1)


def unet_convlstm_ref(x, params):
    B, T, C, H, W = x.shape
    hd = params["enc_b"].shape[0]
    xs = jnp.transpose(x, (0, 1, 3, 4, 2))
    h = jnp.zeros((B, H, W, hd), jnp.float32)
    c = jnp.zeros((B, H, W, hd), jnp.float32)
    for t in range(T):
        xe = _conv3x3_ref(xs[:, t], params["enc_w"], params["enc_b"])
        comb = jnp.concatenate([xe, h], axis=-1)
        gates = _conv3x3_ref(comb, params["lstm_w"], params["lstm_b"])
        i_g = jax.nn.sigmoid(gates[..., 0 * hd:1 * hd])
        f_g = jax.nn.sigmoid(gates[..., 1 * hd:2 * hd])
        o_g = jax.nn.sigmoid(gates[..., 2 * hd:3 * hd])
        g_g = jnp.tanh(gates[..., 3 * hd:4 * hd])
        c = f_g * c + i_g * g_g
        h = o_g * jnp.tanh(c)
    out = _conv3x3_ref(h, params["dec_w"], params["dec_b"])
    return jnp.transpose(out, (0, 3, 1, 2))


# ------------------------------- main ----------------------------------------
if __name__ == "__main__":
    B, T, C, H, W = 2, 4, 3, 16, 16
    hidden, n_classes = 32, 2

    key = jax.random.PRNGKey(0)
    ks = jax.random.split(key, 8)
    scale = 0.1
    params = {
        "enc_w":  scale * jax.random.normal(ks[0], (3, 3, C, hidden), jnp.float32),
        "enc_b":  scale * jax.random.normal(ks[1], (hidden,), jnp.float32),
        # single fused ConvLSTM conv over cat([x, h]) channels, like nn.Conv2d
        "lstm_w": scale * jax.random.normal(ks[2], (3, 3, 2 * hidden, 4 * hidden),
                                            jnp.float32),
        "lstm_b": scale * jax.random.normal(ks[3], (4 * hidden,), jnp.float32),
        "dec_w":  scale * jax.random.normal(ks[4], (3, 3, hidden, n_classes),
                                            jnp.float32),
        "dec_b":  scale * jax.random.normal(ks[5], (n_classes,), jnp.float32),
    }
    x = jax.random.normal(ks[6], (B, T, C, H, W), jnp.float32)

    out = jax.block_until_ready(unet_convlstm_pallas(x, params))
    ref = jax.block_until_ready(unet_convlstm_ref(x, params))

    assert out.shape == (B, n_classes, H, W), out.shape
    max_err = float(jnp.max(jnp.abs(out - ref)))
    assert jnp.allclose(out, ref, atol=2e-3, rtol=2e-3), max_err
    print("KERNEL_OK")
</pallas_src>

<mosaic_0001>
module attributes {stable_mosaic.version = 11 : i64} {
  func.func @probe(%arg0: memref<8x128xf32, #tpu.memory_space<vmem>>, %arg1: memref<8x128xf32, #tpu.memory_space<vmem>>) attributes {dimension_semantics = [], scalar_prefetch = 0 : i64, scratch_operands = 0 : i64, tpu.core_type = #tpu.core_type<tc>} {
    %c0 = arith.constant 0 : index
    %c0_0 = arith.constant 0 : index
    %0 = vector.load %arg0[%c0, %c0_0] : memref<8x128xf32, #tpu.memory_space<vmem>>, vector<8x128xf32>
    %c1_i32 = arith.constant 1 : i32
    %1 = tpu.dynamic_rotate %0 by %c1_i32 dim 1 : vector<8x128xf32>, i32 -> vector<8x128xf32>
    %c0_1 = arith.constant 0 : index
    %c0_2 = arith.constant 0 : index
    %2 = vector.load %arg1[%c0_1, %c0_2] : memref<8x128xf32, #tpu.memory_space<vmem>>, vector<8x128xf32>
    tpu.vector_store %arg1[%c0_1, %c0_2], %1 {strides = array<i32>} : memref<8x128xf32, #tpu.memory_space<vmem>>, vector<8x128xf32>,
    return
  }
}

</mosaic_0001>

<llo_original>
// kernel: tpu_custom_call.1
$region0: #{tpu_custom_call.1}
  #allocation0 [shape = 'u32[]', space=smem, size = 0x4, offset = 0x4, fixed_abs, tag = 'smem constant byte address 0x4 - core index']
  #allocation1 [shape = 'u32[72,128]{1,0:T(1,128)}', space=vmem, size = 0x9000, scoped, tag = 'internal scratch']
  %s0 = inlined_call_operand.hbm [shape: f32[8,128], index: 0, kind: input, shape index: {}]
  %s1 = inlined_call_operand.hbm [shape: f32[8,128], index: 1, kind: output, shape index: {}]
  %s2 = sld [smem:[#allocation0]]
  $region18: #{tpu_custom_call.1} parent=0
    _
  %s4 = ssub.s32 1, %s2
  %s5 = scalar_select 0, %s4, %s2
  $region1: #{tpu_custom_call.1} parent=0
    #allocation2 [shape = 'u8[4096]{0}', space=vmem, size = 0x1000, scoped, tag = 'input window, operand 0, single buffered']
    #allocation3 [shape = 's32[1]{0}', space=sflag, size = 0x4, scoped, tag = 'scoped memory for tpu_custom_call.1']
    #allocation4 [shape = 's32[1]{0}', space=sflag, size = 0x4, scoped, tag = 'scoped memory for tpu_custom_call.1']
    #allocation5 [shape = 'u8[4096]{0}', space=vmem, size = 0x1000, scoped, tag = 'output window, operand 0, single buffered']
    %6 = vsyncpa [#allocation3], 0
    %7 = vsyncpa [#allocation4], 0
    // Predicated region
    $region2: #{tpu_custom_call.1} parent=1 // pred_check
      _
    $region3: #{tpu_custom_call.1} parent=1 // pred_check_branch
      %9 = sbr.rel (0) target = $region5
    $region4: #{tpu_custom_call.1} parent=1 // pred_region
      %11 = vsyncadd [#allocation3], 0
      %s13 = sshll.u32 %s0, 4
      %s14 = int_to_ptr.hbm [resolvable:$true] %s13
      %s15 = sshll.u32 [#allocation2], 4
      %s16 = int_to_ptr.vmem [resolvable:$true] %s15
      %18 = dma.hbm_to_vmem [thread:$0]  %s14, 128, %s16, [#allocation3]
    $region5: #{tpu_custom_call.1} parent=1 // pred_fallthru
      _
    // Predicated region
    $region6: #{tpu_custom_call.1} parent=1 // pred_check
      _
    $region7: #{tpu_custom_call.1} parent=1 // pred_check_branch
      %20 = sbr.rel (0) target = $region9
    $region8: #{tpu_custom_call.1} parent=1 // pred_region
      %22 = dma.done [#allocation3], 128
    $region9: #{tpu_custom_call.1} parent=1 // pred_fallthru
      _
    %v23 = vld [vmem:[#allocation2] sm:$0xff]
    %24 = vrot.lane.b32.xlu0 %v23, 1
    %v25 = vpop.permute.xlu0 %24
    %26 = vst [vmem:[#allocation5] sm:$0xff] %v25
    // Predicated region
    $region10: #{tpu_custom_call.1} parent=1 // pred_check
      _
    $region11: #{tpu_custom_call.1} parent=1 // pred_check_branch
      %28 = sbr.rel (0) target = $region13
    $region12: #{tpu_custom_call.1} parent=1 // pred_region
      %30 = vsyncadd [#allocation4], 0
      %s32 = sshll.u32 [#allocation5], 4
      %s33 = int_to_ptr.vmem [resolvable:$true] %s32
      %s34 = sshll.u32 %s1, 4
      %s35 = int_to_ptr.hbm [resolvable:$true] %s34
      %37 = dma.vmem_to_hbm [thread:$0]  %s33, 128, %s35, [#allocation4]
    $region13: #{tpu_custom_call.1} parent=1 // pred_fallthru
      _
    // Predicated region
    $region14: #{tpu_custom_call.1} parent=1 // pred_check
      _
    $region15: #{tpu_custom_call.1} parent=1 // pred_check_branch
      %39 = sbr.rel (0) target = $region17
    $region16: #{tpu_custom_call.1} parent=1 // pred_region
      %41 = dma.done [#allocation4], 128
    $region17: #{tpu_custom_call.1} parent=1 // pred_fallthru
      _
    %42 = vsyncpa [#allocation3], 1
    %43 = vsyncpa [#allocation4], 1

</llo_original>
